<compile_context>
chip_gen: v7x
topology: tpu7x:2x2x1
jax: 0.10.0
libtpu: 0.0.40
codegen_flags: <defaults>
</compile_context>

<pallas_src>
import functools

import numpy as np
import jax
import jax.numpy as jnp
from jax.experimental import pallas as pl
from jax.experimental.pallas import tpu as pltpu


def _feature_update_kernel(x_ref, mqk_ref, s0_ref, vo_ref, bo_ref, o_ref, *,
                           compute_dtype):
    cdt = compute_dtype
    approx = (cdt != jnp.float32)

    x = x_ref[...]                                                     # [TQ, C] f32

    # Scores against the Bp unique (padded) keys. Wq/bq and the 1/sqrt(128) scale are
    # pre-folded into M_qk / s0; log(node_count) is folded into s0 (pads carry -inf).
    scores = jnp.dot(x.astype(cdt), mqk_ref[...],
                     preferred_element_type=jnp.float32) + s0_ref[...]  # [TQ, Bp] f32

    # Count-weighted softmax over unique keys == softmax over the N duplicated keys.
    # Padded columns are -inf: excluded from the max, exp() gives exactly 0.
    m = jnp.max(scores, axis=-1, keepdims=True)
    w = jnp.exp(scores - m)                                             # [TQ, Bp] f32
    denom = jnp.sum(w, axis=-1, keepdims=True)                          # [TQ, 1]

    # Value matmul against V' = V @ Wo (output projection pre-folded); normalize after
    # the matmul with a cheap [TQ, C] scale (approx reciprocal -> EUP slot).
    num = jnp.dot(w.astype(cdt), vo_ref[...],
                  preferred_element_type=jnp.float32)                   # [TQ, C]
    out = num * pl.reciprocal(denom, approx=approx) + bo_ref[...] + x
    o_ref[...] = jnp.maximum(out, 0.0).astype(o_ref.dtype)


def _pick_row_tile(n, tq):
    """Largest sublane-aligned tile <= tq that divides n (avoids padding x); else pad."""
    tq = max(8, (tq // 8) * 8)
    t = min(tq, n)
    if n % t == 0:
        return t, False
    for cand in range(t - (t % 8), 7, -8):
        if cand > 0 and n % cand == 0:
            return cand, False
    return t, True


def feature_update_pallas(x, diagram_vector, node_counts, params, *,
                          tq=512, compute_dtype=jnp.bfloat16):
    """x: [N, C] f32, diagram_vector: [B, D] f32, node_counts: [B] int (nodes per graph)."""
    N, C = x.shape
    B, D = diagram_vector.shape
    assert params["wq"].shape[1] == C, \
        "residual `out(attn) + x` requires in_channels == out_channels"

    hp = jax.lax.Precision.HIGHEST
    scale = jnp.float32(1.0 / np.sqrt(128.0))   # hard-coded scale, as in the reference

    # ---- one-time precompute on the B unique graphs (tiny XLA matmuls, f32) ----
    dv = diagram_vector.astype(jnp.float32)
    k = jnp.dot(dv, params["wk"], precision=hp) + params["bk"]           # [B, C]
    v = jnp.dot(dv, params["wv"], precision=hp) + params["bv"]           # [B, C]

    # Pad the unique-key axis to a multiple of 8 (sublane). Padded keys get bias -inf.
    Bp = max(8, ((B + 7) // 8) * 8)
    k_p = jnp.zeros((Bp, C), jnp.float32).at[:B].set(k)
    v_p = jnp.zeros((Bp, C), jnp.float32).at[:B].set(v)

    counts = node_counts.astype(jnp.float32)
    log_cnt = jnp.full((Bp,), -jnp.inf, jnp.float32).at[:B].set(
        jnp.where(counts > 0, jnp.log(counts), -jnp.inf))

    mqk = (jnp.dot(params["wq"], k_p.T, precision=hp) * scale).astype(compute_dtype)  # [C, Bp]
    s0 = jnp.dot(params["bq"], k_p.T, precision=hp) * scale + log_cnt[None, :]        # [1, Bp] f32
    vo = jnp.dot(v_p, params["wo"], precision=hp).astype(compute_dtype)               # [Bp, C]
    bo = params["bo"].astype(jnp.float32)                                             # [1, C]

    # ---- row tiling: prefer a tile that divides N so x is streamed without a pad copy ----
    tq_eff, need_pad = _pick_row_tile(N, tq)
    if need_pad:
        # TODO(synk): pad x once at allocation time upstream; this copy is an extra HBM pass.
        Np = pl.cdiv(N, tq_eff) * tq_eff
        x_in = jnp.zeros((Np, C), x.dtype).at[:N].set(x)
    else:
        Np = N
        x_in = x
    n_tiles = Np // tq_eff

    resident = lambda i: (0, 0)       # folded weights: fetched once, stay resident in VMEM
    streamed = lambda i: (i, 0)       # x / out: one row tile per grid step (double-buffered)

    cost = pl.CostEstimate(
        flops=4 * Np * C * Bp + 6 * Np * C,
        transcendentals=Np * Bp + Np,
        bytes_accessed=2 * Np * C * 4 + (2 * C * Bp + Bp * C + C) * 4,
    )

    out = pl.pallas_call(
        functools.partial(_feature_update_kernel, compute_dtype=compute_dtype),
        out_shape=jax.ShapeDtypeStruct((Np, C), jnp.float32),
        grid=(n_tiles,),
        in_specs=[
            pl.BlockSpec((tq_eff, C), streamed),   # x
            pl.BlockSpec((C, Bp), resident),       # M_qk = Wq @ K.T * scale
            pl.BlockSpec((1, Bp), resident),       # s0 = bq @ K.T * scale + log(count)
            pl.BlockSpec((Bp, C), resident),       # V' = V @ Wo
            pl.BlockSpec((1, C), resident),        # bo
        ],
        out_specs=pl.BlockSpec((tq_eff, C), streamed),
        # Output has the same shape/dtype as x: write it back in place.
        input_output_aliases={0: 0},
        # Row tiles are independent -> v7x shards them across its 2 TensorCores.
        compiler_params=pltpu.CompilerParams(dimension_semantics=("parallel",)),
        cost_estimate=cost,
    )(x_in, mqk, s0, vo, bo)

    return out if Np == N else out[:N]


def init_params(key, in_channels, out_channels, diagram_vector_size):
    """Deterministic synthetic init (PyTorch-Linear-style uniform bounds)."""
    ks = jax.random.split(key, 8)

    def lin(kw, kb, fan_in, fan_out):
        bound = 1.0 / np.sqrt(fan_in)
        w = jax.random.uniform(kw, (fan_in, fan_out), jnp.float32, -bound, bound)
        b = jax.random.uniform(kb, (1, fan_out), jnp.float32, -bound, bound)
        return w, b

    wq, bq = lin(ks[0], ks[1], in_channels, out_channels)
    wk, bk = lin(ks[2], ks[3], diagram_vector_size, out_channels)
    wv, bv = lin(ks[4], ks[5], diagram_vector_size, out_channels)
    wo, bo = lin(ks[6], ks[7], out_channels, out_channels)
    return dict(wq=wq, bq=bq, wk=wk, bk=bk, wv=wv, bv=bv, wo=wo, bo=bo)


def feature_update_reference(x, diagram_vector, batch, num_graphs, params):
    """Pure-f32 JAX transcription of the PyTorch forward (softmax over N repeated keys)."""
    node_counts = jnp.bincount(batch, length=num_graphs)
    rdv = jnp.repeat(diagram_vector, node_counts, axis=0, total_repeat_length=x.shape[0])
    q = x @ params["wq"] + params["bq"]
    k = rdv @ params["wk"] + params["bk"]
    v = rdv @ params["wv"] + params["bv"]
    attn = jax.nn.softmax((q @ k.T) / np.sqrt(128.0), axis=-1)
    combined = (attn @ v) @ params["wo"] + params["bo"] + x
    return jnp.maximum(combined, 0.0)


if __name__ == "__main__":
    key = jax.random.PRNGKey(0)
    k_x, k_dv, k_p = jax.random.split(key, 3)

    # Lane-dense small shapes: 256 nodes over 4 graphs, channels = 128 (residual needs in == out).
    num_graphs = 4
    per_graph = np.array([100, 60, 64, 32], dtype=np.int32)
    N = int(per_graph.sum())                      # 256
    in_channels = out_channels = 128
    diagram_vector_size = 256

    x = jax.random.normal(k_x, (N, in_channels), jnp.float32)
    diagram_vector = jax.random.normal(k_dv, (num_graphs, diagram_vector_size), jnp.float32)
    # Sorted / contiguous-per-graph batch vector, as torch.repeat_interleave implicitly assumes.
    batch = jnp.asarray(np.repeat(np.arange(num_graphs, dtype=np.int32), per_graph))

    params = init_params(k_p, in_channels, out_channels, diagram_vector_size)

    # Glue matching torch.bincount: per-graph node counts.
    node_counts = jnp.bincount(batch, length=num_graphs)

    ref = jax.block_until_ready(
        feature_update_reference(x, diagram_vector, batch, num_graphs, params))

    # f32 path: verifies the folded-weight / grouped-key softmax algebra against the
    # repeated-key reference (exact reciprocal, f32 MXU operands).
    out_f32 = jax.block_until_ready(
        feature_update_pallas(x, diagram_vector, node_counts, params,
                              compute_dtype=jnp.float32))
    np.testing.assert_allclose(np.asarray(out_f32), np.asarray(ref), rtol=1e-4, atol=1e-4)

    # bf16-operand path (the fast one): tolerance loosened for bf16 MXU operands + approx reciprocal.
    out = jax.block_until_ready(
        feature_update_pallas(x, diagram_vector, node_counts, params,
                              compute_dtype=jnp.bfloat16))
    np.testing.assert_allclose(np.asarray(out), np.asarray(ref), rtol=5e-2, atol=5e-2)

    print("KERNEL_OK")
</pallas_src>

<mosaic_0001>
module attributes {stable_mosaic.version = 11 : i64} {
  func.func @_feature_update_kernel(%arg0: i32, %arg1: memref<256x128xf32, #tpu.memory_space<vmem>>, %arg2: memref<128x8xf32, #tpu.memory_space<vmem>>, %arg3: memref<1x8xf32, #tpu.memory_space<vmem>>, %arg4: memref<8x128xf32, #tpu.memory_space<vmem>>, %arg5: memref<1x128xf32, #tpu.memory_space<vmem>>, %arg6: memref<256x128xf32, #tpu.memory_space<vmem>>) attributes {dimension_semantics = [#tpu.dimension_semantics<parallel>], iteration_bounds = array<i64: 1>, scalar_prefetch = 0 : i64, scratch_operands = 0 : i64, tpu.core_type = #tpu.core_type<tc>, window_params = [{transform_indices = @transform_0, window_bounds = array<i64: 256, 128>}, {pipeline_mode = #tpu.pipeline_mode<synchronous>, transform_indices = @transform_1, window_bounds = array<i64: 128, 8>}, {pipeline_mode = #tpu.pipeline_mode<synchronous>, transform_indices = @transform_2, window_bounds = array<i64: 1, 8>}, {pipeline_mode = #tpu.pipeline_mode<synchronous>, transform_indices = @transform_3, window_bounds = array<i64: 8, 128>}, {pipeline_mode = #tpu.pipeline_mode<synchronous>, transform_indices = @transform_4, window_bounds = array<i64: 1, 128>}, {transform_indices = @transform_5, window_bounds = array<i64: 256, 128>}]} {
    %c0 = arith.constant 0 : index
    %c0_0 = arith.constant 0 : index
    %0 = vector.load %arg1[%c0, %c0_0] : memref<256x128xf32, #tpu.memory_space<vmem>>, vector<256x128xf32>
    %c0_1 = arith.constant 0 : index
    %c0_2 = arith.constant 0 : index
    %1 = vector.load %arg2[%c0_1, %c0_2] : memref<128x8xf32, #tpu.memory_space<vmem>>, vector<128x8xf32>
    %cst = arith.constant dense<0.000000e+00> : vector<256x8xf32>
    %2 = tpu.matmul %0, %1, %cst {dimension_numbers = #tpu.dot_dimension_numbers<[1], [0], [0], [1], [0, 0, 1, 1], [], []>} : vector<256x128xf32>, vector<128x8xf32>, vector<256x8xf32> -> vector<256x8xf32>
    %c0_3 = arith.constant 0 : index
    %c0_4 = arith.constant 0 : index
    %3 = vector.load %arg3[%c0_3, %c0_4] : memref<1x8xf32, #tpu.memory_space<vmem>>, vector<1x8xf32>
    %4 = vector.broadcast %3 : vector<1x8xf32> to vector<256x8xf32>
    %5 = arith.addf %2, %4 : vector<256x8xf32>
    %cst_5 = arith.constant dense<0xFF800000> : vector<256xf32>
    %6 = vector.multi_reduction <maximumf>, %5, %cst_5 [1] : vector<256x8xf32> to vector<256xf32>
    %7 = vector.shape_cast %6 : vector<256xf32> to vector<256x1xf32>
    %8 = vector.broadcast %7 : vector<256x1xf32> to vector<256x8xf32>
    %9 = arith.subf %5, %8 : vector<256x8xf32>
    %10 = math.exp %9 : vector<256x8xf32>
    %cst_6 = arith.constant dense<0.000000e+00> : vector<256xf32>
    %11 = vector.multi_reduction <add>, %10, %cst_6 [1] : vector<256x8xf32> to vector<256xf32>
    %12 = vector.shape_cast %11 : vector<256xf32> to vector<256x1xf32>
    %c0_7 = arith.constant 0 : index
    %c0_8 = arith.constant 0 : index
    %13 = vector.load %arg4[%c0_7, %c0_8] : memref<8x128xf32, #tpu.memory_space<vmem>>, vector<8x128xf32>
    %cst_9 = arith.constant dense<0.000000e+00> : vector<256x128xf32>
    %14 = tpu.matmul %10, %13, %cst_9 {dimension_numbers = #tpu.dot_dimension_numbers<[1], [0], [0], [1], [0, 0, 1, 1], [], []>} : vector<256x8xf32>, vector<8x128xf32>, vector<256x128xf32> -> vector<256x128xf32>
    %15 = tpu.reciprocal %12 : vector<256x1xf32> -> vector<256x1xf32>
    %16 = vector.broadcast %15 : vector<256x1xf32> to vector<256x128xf32>
    %17 = arith.mulf %14, %16 : vector<256x128xf32>
    %c0_10 = arith.constant 0 : index
    %c0_11 = arith.constant 0 : index
    %18 = vector.load %arg5[%c0_10, %c0_11] : memref<1x128xf32, #tpu.memory_space<vmem>>, vector<1x128xf32>
    %19 = vector.broadcast %18 : vector<1x128xf32> to vector<256x128xf32>
    %20 = arith.addf %17, %19 : vector<256x128xf32>
    %21 = arith.addf %20, %0 : vector<256x128xf32>
    %cst_12 = arith.constant 0.000000e+00 : f32
    %22 = vector.broadcast %cst_12 : f32 to vector<256x128xf32>
    %23 = arith.maximumf %21, %22 : vector<256x128xf32>
    %c0_13 = arith.constant 0 : index
    %c0_14 = arith.constant 0 : index
    %24 = vector.load %arg6[%c0_13, %c0_14] : memref<256x128xf32, #tpu.memory_space<vmem>>, vector<256x128xf32>
    tpu.vector_store %arg6[%c0_13, %c0_14], %23 {strides = array<i32>} : memref<256x128xf32, #tpu.memory_space<vmem>>, vector<256x128xf32>,
    return
  }
  func.func @transform_0(%arg0: i32) -> (i32, i32) {
    %c0_i32 = arith.constant 0 : i32
    %c0_i32_0 = arith.constant 0 : i32
    return %arg0, %c0_i32 : i32, i32
  }
  func.func @transform_1(%arg0: i32) -> (i32, i32) {
    %c0_i32 = arith.constant 0 : i32
    %c0_i32_0 = arith.constant 0 : i32
    %c0_i32_1 = arith.constant 0 : i32
    return %c0_i32, %c0_i32_0 : i32, i32
  }
  func.func @transform_2(%arg0: i32) -> (i32, i32) {
    %c0_i32 = arith.constant 0 : i32
    %c0_i32_0 = arith.constant 0 : i32
    %c0_i32_1 = arith.constant 0 : i32
    return %c0_i32, %c0_i32_0 : i32, i32
  }
  func.func @transform_3(%arg0: i32) -> (i32, i32) {
    %c0_i32 = arith.constant 0 : i32
    %c0_i32_0 = arith.constant 0 : i32
    %c0_i32_1 = arith.constant 0 : i32
    return %c0_i32, %c0_i32_0 : i32, i32
  }
  func.func @transform_4(%arg0: i32) -> (i32, i32) {
    %c0_i32 = arith.constant 0 : i32
    %c0_i32_0 = arith.constant 0 : i32
    %c0_i32_1 = arith.constant 0 : i32
    return %c0_i32, %c0_i32_0 : i32, i32
  }
  func.func @transform_5(%arg0: i32) -> (i32, i32) {
    %c0_i32 = arith.constant 0 : i32
    %c0_i32_0 = arith.constant 0 : i32
    return %arg0, %c0_i32 : i32, i32
  }
}

</mosaic_0001>

<llo_original>
// kernel: tpu_custom_call.1
$region0: #{tpu_custom_call.1}
  #allocation0 [shape = 'u32[]', space=smem, size = 0x4, offset = 0x4, fixed_abs, tag = 'smem constant byte address 0x4 - core index']
  #allocation1 [shape = 'u32[144,128]{1,0:T(1,128)}', space=vmem, size = 0x12000, scoped, tag = 'internal scratch']
  %s0 = inlined_call_operand.hbm [shape: f32[256,128], index: 0, kind: input, shape index: {}, may-alias: {0,5}]
  %s1 = inlined_call_operand.vmem [shape: f32[128,8], index: 1, kind: input, shape index: {}]
  %s2 = inlined_call_operand.vmem [shape: f32[1,8], index: 2, kind: input, shape index: {}]
  %s3 = inlined_call_operand.vmem [shape: f32[8,128], index: 3, kind: input, shape index: {}]
  %s4 = inlined_call_operand.vmem [shape: f32[1,128], index: 4, kind: input, shape index: {}]
  %s5 = inlined_call_operand.hbm [shape: f32[256,128], index: 5, kind: output, shape index: {}, may-alias: {0,5}]
  %s6 = sld [smem:[#allocation0]]
  $region34: #{tpu_custom_call.1} parent=0
    _
  %s8 = ssub.s32 1, %s6
  %s9 = scalar_select 0, %s8, %s6
  $region1: #{tpu_custom_call.1} parent=0
    #allocation2 [shape = 'u8[131072]{0}', space=vmem, size = 0x20000, scoped, tag = 'input window, operand 0, single buffered']
    #allocation3 [shape = 's32[1]{0}', space=sflag, size = 0x4, scoped, tag = 'scoped memory for tpu_custom_call.1']
    #allocation4 [shape = 's32[1]{0}', space=sflag, size = 0x4, scoped, tag = 'scoped memory for tpu_custom_call.1']
    #allocation5 [shape = 'u8[131072]{0}', space=vmem, size = 0x20000, scoped, tag = 'output window, operand 0, single buffered']
    %10 = vsyncpa [#allocation3], 0
    %11 = vsyncpa [#allocation4], 0
    // Predicated region
    $region2: #{tpu_custom_call.1} parent=1 // pred_check
      _
    $region3: #{tpu_custom_call.1} parent=1 // pred_check_branch
      %13 = sbr.rel (0) target = $region5
    $region4: #{tpu_custom_call.1} parent=1 // pred_region
      %s15 = ssub.s32 4096, 4096
      %16 = vsyncadd [#allocation3], %s15
      %s17 = sshll.u32 [#allocation2], 4
      %s18 = int_to_ptr.vmem [resolvable:$true] %s17
      %23 = dma.hbm_to_vmem [thread:$0]  %s0, 4096, %s18, [#allocation3], 128, 128, 8
    $region5: #{tpu_custom_call.1} parent=1 // pred_fallthru
      _
    // Predicated region
    $region6: #{tpu_custom_call.1} parent=1 // pred_check
      _
    $region7: #{tpu_custom_call.1} parent=1 // pred_check_branch
      %25 = sbr.rel (0) target = $region9
    $region8: #{tpu_custom_call.1} parent=1 // pred_region
      _
    $region9: #{tpu_custom_call.1} parent=1 // pred_fallthru
      _
    // Predicated region
    $region10: #{tpu_custom_call.1} parent=1 // pred_check
      _
    $region11: #{tpu_custom_call.1} parent=1 // pred_check_branch
      %27 = sbr.rel (0) target = $region13
    $region12: #{tpu_custom_call.1} parent=1 // pred_region
      _
    $region13: #{tpu_custom_call.1} parent=1 // pred_fallthru
      _
    // Predicated region
    $region14: #{tpu_custom_call.1} parent=1 // pred_check
      _
    $region15: #{tpu_custom_call.1} parent=1 // pred_check_branch
      %29 = sbr.rel (0) target = $region17
    $region16: #{tpu_custom_call.1} parent=1 // pred_region
      _
    $region17: #{tpu_custom_call.1} parent=1 // pred_fallthru
      _
    // Predicated region
    $region18: #{tpu_custom_call.1} parent=1 // pred_check
      _
    $region19: #{tpu_custom_call.1} parent=1 // pred_check_branch
      %31 = sbr.rel (0) target = $region21
    $region20: #{tpu_custom_call.1} parent=1 // pred_region
      _
    $region21: #{tpu_custom_call.1} parent=1 // pred_fallthru
      _
    // Predicated region
    $region22: #{tpu_custom_call.1} parent=1 // pred_check
      _
    $region23: #{tpu_custom_call.1} parent=1 // pred_check_branch
      %33 = sbr.rel (0) target = $region25
    $region24: #{tpu_custom_call.1} parent=1 // pred_region
      %34 = dma.done [#allocation3], 4096
    $region25: #{tpu_custom_call.1} parent=1 // pred_fallthru
      _
    %v35 = vld [vmem:[#allocation2] sm:$0xff]
    %v36 = vld [vmem:[#allocation2 + $0x8] sm:$0xff]
    %v37 = vld [vmem:[#allocation2 + $0x10] sm:$0xff]
    %v38 = vld [vmem:[#allocation2 + $0x18] sm:$0xff]
    %v39 = vld [vmem:[#allocation2 + $0x20] sm:$0xff]
    %v40 = vld [vmem:[#allocation2 + $0x28] sm:$0xff]
    %v41 = vld [vmem:[#allocation2 + $0x30] sm:$0xff]
    %v42 = vld [vmem:[#allocation2 + $0x38] sm:$0xff]
    %v43 = vld [vmem:[#allocation2 + $0x40] sm:$0xff]
    %v44 = vld [vmem:[#allocation2 + $0x48] sm:$0xff]
    %v45 = vld [vmem:[#allocation2 + $0x50] sm:$0xff]
    %v46 = vld [vmem:[#allocation2 + $0x58] sm:$0xff]
    %v47 = vld [vmem:[#allocation2 + $0x60] sm:$0xff]
    %v48 = vld [vmem:[#allocation2 + $0x68] sm:$0xff]
    %v49 = vld [vmem:[#allocation2 + $0x70] sm:$0xff]
    %v50 = vld [vmem:[#allocation2 + $0x78] sm:$0xff]
    %v51 = vld [vmem:[#allocation2 + $0x80] sm:$0xff]
    %v52 = vld [vmem:[#allocation2 + $0x88] sm:$0xff]
    %v53 = vld [vmem:[#allocation2 + $0x90] sm:$0xff]
    %v54 = vld [vmem:[#allocation2 + $0x98] sm:$0xff]
    %v55 = vld [vmem:[#allocation2 + $0xa0] sm:$0xff]
    %v56 = vld [vmem:[#allocation2 + $0xa8] sm:$0xff]
    %v57 = vld [vmem:[#allocation2 + $0xb0] sm:$0xff]
    %v58 = vld [vmem:[#allocation2 + $0xb8] sm:$0xff]
    %v59 = vld [vmem:[#allocation2 + $0xc0] sm:$0xff]
    %v60 = vld [vmem:[#allocation2 + $0xc8] sm:$0xff]
    %v61 = vld [vmem:[#allocation2 + $0xd0] sm:$0xff]
    %v62 = vld [vmem:[#allocation2 + $0xd8] sm:$0xff]
    %v63 = vld [vmem:[#allocation2 + $0xe0] sm:$0xff]
    %v64 = vld [vmem:[#allocation2 + $0xe8] sm:$0xff]
    %v65 = vld [vmem:[#allocation2 + $0xf0] sm:$0xff]
    %v66 = vld [vmem:[#allocation2 + $0xf8] sm:$0xff]
    %v67 = vld [vmem:[%s1] sm:$0xff]
    %v68 = vld [vmem:[%s1 + $0x8] sm:$0xff]
    %v69 = vld [vmem:[%s1 + $0x10] sm:$0xff]
    %v70 = vld [vmem:[%s1 + $0x18] sm:$0xff]
    %v71 = vld [vmem:[%s1 + $0x20] sm:$0xff]
    %v72 = vld [vmem:[%s1 + $0x28] sm:$0xff]
    %v73 = vld [vmem:[%s1 + $0x30] sm:$0xff]
    %v74 = vld [vmem:[%s1 + $0x38] sm:$0xff]
    %v75 = vld [vmem:[%s1 + $0x40] sm:$0xff]
    %v76 = vld [vmem:[%s1 + $0x48] sm:$0xff]
    %v77 = vld [vmem:[%s1 + $0x50] sm:$0xff]
    %v78 = vld [vmem:[%s1 + $0x58] sm:$0xff]
    %v79 = vld [vmem:[%s1 + $0x60] sm:$0xff]
    %v80 = vld [vmem:[%s1 + $0x68] sm:$0xff]
    %v81 = vld [vmem:[%s1 + $0x70] sm:$0xff]
    %v82 = vld [vmem:[%s1 + $0x78] sm:$0xff]
    %v83 = vld [vmem:[%s2] sm:$0x1]
    %v85 = vlaneseq
    %v86 = vshrl.u32 %v85, 7
    %v87 = vsub.s32 0, %v86
    %v88 = vrot.slane %v83, %v87
    %90 = vmatprep.subr.mxu0 0.0
    %91 = vmatpush1.msra.mxu0 %v67
    %92 = vmatprep.subr.mxu0 0.0
    %93 = vmatpush1.msra.mxu0 %v68
    %94 = vmatprep.subr.mxu0 0.0
    %95 = vmatpush1.msra.mxu0 %v69
    %96 = vmatprep.subr.mxu0 0.0
    %97 = vmatpush1.msra.mxu0 %v70
    %98 = vmatprep.subr.mxu0 0.0
    %99 = vmatpush1.msra.mxu0 %v71
    %100 = vmatprep.subr.mxu0 0.0
    %101 = vmatpush1.msra.mxu0 %v72
    %102 = vmatprep.subr.mxu0 0.0
    %103 = vmatpush1.msra.mxu0 %v73
    %104 = vmatprep.subr.mxu0 0.0
    %105 = vmatpush1.msra.mxu0 %v74
    %106 = vmatprep.subr.mxu0 0.0
    %107 = vmatpush1.msra.mxu0 %v75
    %108 = vmatprep.subr.mxu0 0.0
    %109 = vmatpush1.msra.mxu0 %v76
    %110 = vmatprep.subr.mxu0 0.0
    %111 = vmatpush1.msra.mxu0 %v77
    %112 = vmatprep.subr.mxu0 0.0
    %113 = vmatpush1.msra.mxu0 %v78
    %114 = vmatprep.subr.mxu0 0.0
    %115 = vmatpush1.msra.mxu0 %v79
    %116 = vmatprep.subr.mxu0 0.0
    %117 = vmatpush1.msra.mxu0 %v80
    %118 = vmatprep.subr.mxu0 0.0
    %119 = vmatpush1.msra.mxu0 %v81
    %120 = vmatprep.subr.mxu0 0.0
    %121 = vmatpush1.msra.mxu0 %v82
    %122 = vmatprep.subr.mxu0 0.0
    %123 = vmatpush1.msra.mxu0 0.0
    %124 = vmatprep.subr.mxu0 0.0
    %125 = vmatpush1.msra.mxu0 0.0
    %126 = vmatprep.subr.mxu0 0.0
    %127 = vmatpush1.msra.mxu0 0.0
    %128 = vmatprep.subr.mxu0 0.0
    %129 = vmatpush1.msra.mxu0 0.0
    %130 = vmatprep.subr.mxu0 0.0
    %131 = vmatpush1.msra.mxu0 0.0
    %132 = vmatprep.subr.mxu0 0.0
    %133 = vmatpush1.msra.mxu0 0.0
    %134 = vmatprep.subr.mxu0 0.0
    %135 = vmatpush1.msra.mxu0 0.0
    %136 = vmatprep.subr.mxu0 0.0
    %137 = vmatpush1.msra.mxu0 0.0
    %138 = vmatprep.subr.mxu0 0.0
    %139 = vmatpush1.msra.mxu0 0.0
    %140 = vmatprep.subr.mxu0 0.0
    %141 = vmatpush1.msra.mxu0 0.0
    %142 = vmatprep.subr.mxu0 0.0
    %143 = vmatpush1.msra.mxu0 0.0
    %144 = vmatprep.subr.mxu0 0.0
    %145 = vmatpush1.msra.mxu0 0.0
    %146 = vmatprep.subr.mxu0 0.0
    %147 = vmatpush1.msra.mxu0 0.0
    %148 = vmatprep.subr.mxu0 0.0
    %149 = vmatpush1.msra.mxu0 0.0
    %150 = vmatprep.subr.mxu0 0.0
    %151 = vmatpush1.msra.mxu0 0.0
    %152 = vmatprep.subr.mxu0 0.0
    %153 = vmatpush1.msra.mxu0 0.0
    %154 = vmatprep.mubr.f32.mxu0 0.0
    %155 = vmatmul.mubr.f32.gmra.mrb[0].mxu0 %v35
    %v156 = vpop.f32.mrb[0].mxu0
    %v157 = vadd.f32 %v88, %v156
    %v158 = vpop.f32.mrb[0].mxu0
    %159 = vmatprep.mubr.f32.mxu0 0.0
    %160 = vmatmul.mubr.f32.gmra.mrb[0].mxu0 %v36
    %v161 = vpop.f32.mrb[0].mxu0
    %v162 = vadd.f32 %v88, %v161
    %v163 = vpop.f32.mrb[0].mxu0
    %164 = vmatprep.mubr.f32.mxu0 0.0
    %165 = vmatmul.mubr.f32.gmra.mrb[0].mxu0 %v37
    %v166 = vpop.f32.mrb[0].mxu0
    %v167 = vadd.f32 %v88, %v166
    %v168 = vpop.f32.mrb[0].mxu0
    %169 = vmatprep.mubr.f32.mxu0 0.0
    %170 = vmatmul.mubr.f32.gmra.mrb[0].mxu0 %v38
    %v171 = vpop.f32.mrb[0].mxu0
    %v172 = vadd.f32 %v88, %v171
    %v173 = vpop.f32.mrb[0].mxu0
    %174 = vmatprep.mubr.f32.mxu0 0.0
    %175 = vmatmul.mubr.f32.gmra.mrb[0].mxu0 %v39
    %v176 = vpop.f32.mrb[0].mxu0
    %v177 = vadd.f32 %v88, %v176
    %v178 = vpop.f32.mrb[0].mxu0
    %179 = vmatprep.mubr.f32.mxu0 0.0
    %180 = vmatmul.mubr.f32.gmra.mrb[0].mxu0 %v40
    %v181 = vpop.f32.mrb[0].mxu0
    %v182 = vadd.f32 %v88, %v181
    %v183 = vpop.f32.mrb[0].mxu0
    %184 = vmatprep.mubr.f32.mxu0 0.0
    %185 = vmatmul.mubr.f32.gmra.mrb[0].mxu0 %v41
    %v186 = vpop.f32.mrb[0].mxu0
    %v187 = vadd.f32 %v88, %v186
    %v188 = vpop.f32.mrb[0].mxu0
    %189 = vmatprep.mubr.f32.mxu0 0.0
    %190 = vmatmul.mubr.f32.gmra.mrb[0].mxu0 %v42
    %v191 = vpop.f32.mrb[0].mxu0
    %v192 = vadd.f32 %v88, %v191
    %v193 = vpop.f32.mrb[0].mxu0
    %194 = vmatprep.mubr.f32.mxu0 0.0
    %195 = vmatmul.mubr.f32.gmra.mrb[0].mxu0 %v43
    %v196 = vpop.f32.mrb[0].mxu0
    %v197 = vadd.f32 %v88, %v196
    %v198 = vpop.f32.mrb[0].mxu0
    %199 = vmatprep.mubr.f32.mxu0 0.0
    %200 = vmatmul.mubr.f32.gmra.mrb[0].mxu0 %v44
    %v201 = vpop.f32.mrb[0].mxu0
    %v202 = vadd.f32 %v88, %v201
    %v203 = vpop.f32.mrb[0].mxu0
    %204 = vmatprep.mubr.f32.mxu0 0.0
    %205 = vmatmul.mubr.f32.gmra.mrb[0].mxu0 %v45
    %v206 = vpop.f32.mrb[0].mxu0
    %v207 = vadd.f32 %v88, %v206
    %v208 = vpop.f32.mrb[0].mxu0
    %209 = vmatprep.mubr.f32.mxu0 0.0
    %210 = vmatmul.mubr.f32.gmra.mrb[0].mxu0 %v46
    %v211 = vpop.f32.mrb[0].mxu0
    %v212 = vadd.f32 %v88, %v211
    %v213 = vpop.f32.mrb[0].mxu0
    %214 = vmatprep.mubr.f32.mxu0 0.0
    %215 = vmatmul.mubr.f32.gmra.mrb[0].mxu0 %v47
    %v216 = vpop.f32.mrb[0].mxu0
    %v217 = vadd.f32 %v88, %v216
    %v218 = vpop.f32.mrb[0].mxu0
    %219 = vmatprep.mubr.f32.mxu0 0.0
    %220 = vmatmul.mubr.f32.gmra.mrb[0].mxu0 %v48
    %v221 = vpop.f32.mrb[0].mxu0
    %v222 = vadd.f32 %v88, %v221
    %v223 = vpop.f32.mrb[0].mxu0
    %224 = vmatprep.mubr.f32.mxu0 0.0
    %225 = vmatmul.mubr.f32.gmra.mrb[0].mxu0 %v49
    %v226 = vpop.f32.mrb[0].mxu0
    %v227 = vadd.f32 %v88, %v226
    %v228 = vpop.f32.mrb[0].mxu0
    %229 = vmatprep.mubr.f32.mxu0 0.0
    %230 = vmatmul.mubr.f32.gmra.mrb[0].mxu0 %v50
    %v231 = vpop.f32.mrb[0].mxu0
    %v232 = vadd.f32 %v88, %v231
    %v233 = vpop.f32.mrb[0].mxu0
    %234 = vmatprep.mubr.f32.mxu0 0.0
    %235 = vmatmul.mubr.f32.gmra.mrb[0].mxu0 %v51
    %v236 = vpop.f32.mrb[0].mxu0
    %v237 = vadd.f32 %v88, %v236
    %v238 = vpop.f32.mrb[0].mxu0
    %239 = vmatprep.mubr.f32.mxu0 0.0
    %240 = vmatmul.mubr.f32.gmra.mrb[0].mxu0 %v52
    %v241 = vpop.f32.mrb[0].mxu0
    %v242 = vadd.f32 %v88, %v241
    %v243 = vpop.f32.mrb[0].mxu0
    %244 = vmatprep.mubr.f32.mxu0 0.0
    %245 = vmatmul.mubr.f32.gmra.mrb[0].mxu0 %v53
    %v246 = vpop.f32.mrb[0].mxu0
    %v247 = vadd.f32 %v88, %v246
    %v248 = vpop.f32.mrb[0].mxu0
    %249 = vmatprep.mubr.f32.mxu0 0.0
    %250 = vmatmul.mubr.f32.gmra.mrb[0].mxu0 %v54
    %v251 = vpop.f32.mrb[0].mxu0
    %v252 = vadd.f32 %v88, %v251
    %v253 = vpop.f32.mrb[0].mxu0
    %254 = vmatprep.mubr.f32.mxu0 0.0
    %255 = vmatmul.mubr.f32.gmra.mrb[0].mxu0 %v55
    %v256 = vpop.f32.mrb[0].mxu0
    %v257 = vadd.f32 %v88, %v256
    %v258 = vpop.f32.mrb[0].mxu0
    %259 = vmatprep.mubr.f32.mxu0 0.0
    %260 = vmatmul.mubr.f32.gmra.mrb[0].mxu0 %v56
    %v261 = vpop.f32.mrb[0].mxu0
    %v262 = vadd.f32 %v88, %v261
    %v263 = vpop.f32.mrb[0].mxu0
    %264 = vmatprep.mubr.f32.mxu0 0.0
    %265 = vmatmul.mubr.f32.gmra.mrb[0].mxu0 %v57
    %v266 = vpop.f32.mrb[0].mxu0
    %v267 = vadd.f32 %v88, %v266
    %v268 = vpop.f32.mrb[0].mxu0
    %269 = vmatprep.mubr.f32.mxu0 0.0
    %270 = vmatmul.mubr.f32.gmra.mrb[0].mxu0 %v58
    %v271 = vpop.f32.mrb[0].mxu0
    %v272 = vadd.f32 %v88, %v271
    %v273 = vpop.f32.mrb[0].mxu0
    %274 = vmatprep.mubr.f32.mxu0 0.0
    %275 = vmatmul.mubr.f32.gmra.mrb[0].mxu0 %v59
    %v276 = vpop.f32.mrb[0].mxu0
    %v277 = vadd.f32 %v88, %v276
    %v278 = vpop.f32.mrb[0].mxu0
    %279 = vmatprep.mubr.f32.mxu0 0.0
    %280 = vmatmul.mubr.f32.gmra.mrb[0].mxu0 %v60
    %v281 = vpop.f32.mrb[0].mxu0
    %v282 = vadd.f32 %v88, %v281
    %v283 = vpop.f32.mrb[0].mxu0
    %284 = vmatprep.mubr.f32.mxu0 0.0
    %285 = vmatmul.mubr.f32.gmra.mrb[0].mxu0 %v61
    %v286 = vpop.f32.mrb[0].mxu0
    %v287 = vadd.f32 %v88, %v286
    %v288 = vpop.f32.mrb[0].mxu0
    %289 = vmatprep.mubr.f32.mxu0 0.0
    %290 = vmatmul.mubr.f32.gmra.mrb[0].mxu0 %v62
    %v291 = vpop.f32.mrb[0].mxu0
    %v292 = vadd.f32 %v88, %v291
    %v293 = vpop.f32.mrb[0].mxu0
    %294 = vmatprep.mubr.f32.mxu0 0.0
    %295 = vmatmul.mubr.f32.gmra.mrb[0].mxu0 %v63
    %v296 = vpop.f32.mrb[0].mxu0
    %v297 = vadd.f32 %v88, %v296
    %v298 = vpop.f32.mrb[0].mxu0
    %299 = vmatprep.mubr.f32.mxu0 0.0
    %300 = vmatmul.mubr.f32.gmra.mrb[0].mxu0 %v64
    %v301 = vpop.f32.mrb[0].mxu0
    %v302 = vadd.f32 %v88, %v301
    %v303 = vpop.f32.mrb[0].mxu0
    %304 = vmatprep.mubr.f32.mxu0 0.0
    %305 = vmatmul.mubr.f32.gmra.mrb[0].mxu0 %v65
    %v306 = vpop.f32.mrb[0].mxu0
    %v307 = vadd.f32 %v88, %v306
    %v308 = vpop.f32.mrb[0].mxu0
    %309 = vmatprep.mubr.f32.mxu0 0.0
    %310 = vmatmul.mubr.f32.gmra.mrb[0].mxu0 %v66
    %v311 = vpop.f32.mrb[0].mxu0
    %v312 = vadd.f32 %v88, %v311
    %v313 = vpop.f32.mrb[0].mxu0
    %314 = vdwg.mxu0
    %vm315 = vcmask 64512
    %v316 = vsel %vm315, %v157, -inf
    %317 = vmax.xlane.f32.xlu0 %v316
    %v318 = vpop.xlane.xlu0 %317
    %v319 = vsel %vm315, %v162, -inf
    %320 = vmax.xlane.f32.xlu0 %v319
    %v321 = vpop.xlane.xlu0 %320
    %v322 = vsel %vm315, %v167, -inf
    %323 = vmax.xlane.f32.xlu0 %v322
    %v324 = vpop.xlane.xlu0 %323
    %v325 = vsel %vm315, %v172, -inf
    %326 = vmax.xlane.f32.xlu0 %v325
    %v327 = vpop.xlane.xlu0 %326
    %v328 = vsel %vm315, %v177, -inf
    %329 = vmax.xlane.f32.xlu0 %v328
    %v330 = vpop.xlane.xlu0 %329
    %v331 = vsel %vm315, %v182, -inf
    %332 = vmax.xlane.f32.xlu0 %v331
    %v333 = vpop.xlane.xlu0 %332
    %v334 = vsel %vm315, %v187, -inf
    %335 = vmax.xlane.f32.xlu0 %v334
    %v336 = vpop.xlane.xlu0 %335
    %v337 = vsel %vm315, %v192, -inf
    %338 = vmax.xlane.f32.xlu0 %v337
    %v339 = vpop.xlane.xlu0 %338
    %v340 = vsel %vm315, %v197, -inf
    %341 = vmax.xlane.f32.xlu0 %v340
    %v342 = vpop.xlane.xlu0 %341
    %v343 = vsel %vm315, %v202, -inf
    %344 = vmax.xlane.f32.xlu0 %v343
    %v345 = vpop.xlane.xlu0 %344
    %v346 = vsel %vm315, %v207, -inf
    %347 = vmax.xlane.f32.xlu0 %v346
    %v348 = vpop.xlane.xlu0 %347
    %v349 = vsel %vm315, %v212, -inf
    %350 = vmax.xlane.f32.xlu0 %v349
    %v351 = vpop.xlane.xlu0 %350
    %v352 = vsel %vm315, %v217, -inf
    %353 = vmax.xlane.f32.xlu0 %v352
    %v354 = vpop.xlane.xlu0 %353
    %v355 = vsel %vm315, %v222, -inf
    %356 = vmax.xlane.f32.xlu0 %v355
    %v357 = vpop.xlane.xlu0 %356
    %v358 = vsel %vm315, %v227, -inf
    %359 = vmax.xlane.f32.xlu0 %v358
    %v360 = vpop.xlane.xlu0 %359
    %v361 = vsel %vm315, %v232, -inf
    %362 = vmax.xlane.f32.xlu0 %v361
    %v363 = vpop.xlane.xlu0 %362
    %v364 = vsel %vm315, %v237, -inf
    %365 = vmax.xlane.f32.xlu0 %v364
    %v366 = vpop.xlane.xlu0 %365
    %v367 = vsel %vm315, %v242, -inf
    %368 = vmax.xlane.f32.xlu0 %v367
    %v369 = vpop.xlane.xlu0 %368
    %v370 = vsel %vm315, %v247, -inf
    %371 = vmax.xlane.f32.xlu0 %v370
    %v372 = vpop.xlane.xlu0 %371
    %v373 = vsel %vm315, %v252, -inf
    %374 = vmax.xlane.f32.xlu0 %v373
    %v375 = vpop.xlane.xlu0 %374
    %v376 = vsel %vm315, %v257, -inf
    %377 = vmax.xlane.f32.xlu0 %v376
    %v378 = vpop.xlane.xlu0 %377
    %v379 = vsel %vm315, %v262, -inf
    %380 = vmax.xlane.f32.xlu0 %v379
    %v381 = vpop.xlane.xlu0 %380
    %v382 = vsel %vm315, %v267, -inf
    %383 = vmax.xlane.f32.xlu0 %v382
    %v384 = vpop.xlane.xlu0 %383
    %v385 = vsel %vm315, %v272, -inf
    %386 = vmax.xlane.f32.xlu0 %v385
    %v387 = vpop.xlane.xlu0 %386
    %v388 = vsel %vm315, %v277, -inf
    %389 = vmax.xlane.f32.xlu0 %v388
    %v390 = vpop.xlane.xlu0 %389
    %v391 = vsel %vm315, %v282, -inf
    %392 = vmax.xlane.f32.xlu0 %v391
    %v393 = vpop.xlane.xlu0 %392
    %v394 = vsel %vm315, %v287, -inf
    %395 = vmax.xlane.f32.xlu0 %v394
    %v396 = vpop.xlane.xlu0 %395
    %v397 = vsel %vm315, %v292, -inf
    %398 = vmax.xlane.f32.xlu0 %v397
    %v399 = vpop.xlane.xlu0 %398
    %v400 = vsel %vm315, %v297, -inf
    %401 = vmax.xlane.f32.xlu0 %v400
    %v402 = vpop.xlane.xlu0 %401
    %v403 = vsel %vm315, %v302, -inf
    %404 = vmax.xlane.f32.xlu0 %v403
    %v405 = vpop.xlane.xlu0 %404
    %v406 = vsel %vm315, %v307, -inf
    %407 = vmax.xlane.f32.xlu0 %v406
    %v408 = vpop.xlane.xlu0 %407
    %v409 = vsel %vm315, %v312, -inf
    %410 = vmax.xlane.f32.xlu0 %v409
    %v411 = vpop.xlane.xlu0 %410
    %v412 = vsub.f32 %v157, %v318
    %v413 = vsub.f32 %v162, %v321
    %v414 = vsub.f32 %v167, %v324
    %v415 = vsub.f32 %v172, %v327
    %v416 = vsub.f32 %v177, %v330
    %v417 = vsub.f32 %v182, %v333
    %v418 = vsub.f32 %v187, %v336
    %v419 = vsub.f32 %v192, %v339
    %v420 = vsub.f32 %v197, %v342
    %v421 = vsub.f32 %v202, %v345
    %v422 = vsub.f32 %v207, %v348
    %v423 = vsub.f32 %v212, %v351
    %v424 = vsub.f32 %v217, %v354
    %v425 = vsub.f32 %v222, %v357
    %v426 = vsub.f32 %v227, %v360
    %v427 = vsub.f32 %v232, %v363
    %v428 = vsub.f32 %v237, %v366
    %v429 = vsub.f32 %v242, %v369
    %v430 = vsub.f32 %v247, %v372
    %v431 = vsub.f32 %v252, %v375
    %v432 = vsub.f32 %v257, %v378
    %v433 = vsub.f32 %v262, %v381
    %v434 = vsub.f32 %v267, %v384
    %v435 = vsub.f32 %v272, %v387
    %v436 = vsub.f32 %v277, %v390
    %v437 = vsub.f32 %v282, %v393
    %v438 = vsub.f32 %v287, %v396
    %v439 = vsub.f32 %v292, %v399
    %v440 = vsub.f32 %v297, %v402
    %v441 = vsub.f32 %v302, %v405
    %v442 = vsub.f32 %v307, %v408
    %v443 = vsub.f32 %v312, %v411
    %v444 = vmul.f32 %v412, 1.442695
    %v445 = vpow.pop %v444
    %v446 = vmul.f32 %v413, 1.442695
    %v447 = vpow.pop %v446
    %v448 = vmul.f32 %v414, 1.442695
    %v449 = vpow.pop %v448
    %v450 = vmul.f32 %v415, 1.442695
    %v451 = vpow.pop %v450
    %v452 = vmul.f32 %v416, 1.442695
    %v453 = vpow.pop %v452
    %v454 = vmul.f32 %v417, 1.442695
    %v455 = vpow.pop %v454
    %v456 = vmul.f32 %v418, 1.442695
    %v457 = vpow.pop %v456
    %v458 = vmul.f32 %v419, 1.442695
    %v459 = vpow.pop %v458
    %v460 = vmul.f32 %v420, 1.442695
    %v461 = vpow.pop %v460
    %v462 = vmul.f32 %v421, 1.442695
    %v463 = vpow.pop %v462
    %v464 = vmul.f32 %v422, 1.442695
    %v465 = vpow.pop %v464
    %v466 = vmul.f32 %v423, 1.442695
    %v467 = vpow.pop %v466
    %v468 = vmul.f32 %v424, 1.442695
    %v469 = vpow.pop %v468
    %v470 = vmul.f32 %v425, 1.442695
    %v471 = vpow.pop %v470
    %v472 = vmul.f32 %v426, 1.442695
    %v473 = vpow.pop %v472
    %v474 = vmul.f32 %v427, 1.442695
    %v475 = vpow.pop %v474
    %v476 = vmul.f32 %v428, 1.442695
    %v477 = vpow.pop %v476
    %v478 = vmul.f32 %v429, 1.442695
    %v479 = vpow.pop %v478
    %v480 = vmul.f32 %v430, 1.442695
    %v481 = vpow.pop %v480
    %v482 = vmul.f32 %v431, 1.442695
    %v483 = vpow.pop %v482
    %v484 = vmul.f32 %v432, 1.442695
    %v485 = vpow.pop %v484
    %v486 = vmul.f32 %v433, 1.442695
    %v487 = vpow.pop %v486
    %v488 = vmul.f32 %v434, 1.442695
    %v489 = vpow.pop %v488
    %v490 = vmul.f32 %v435, 1.442695
    %v491 = vpow.pop %v490
    %v492 = vmul.f32 %v436, 1.442695
    %v493 = vpow.pop %v492
    %v494 = vmul.f32 %v437, 1.442695
    %v495 = vpow.pop %v494
    %v496 = vmul.f32 %v438, 1.442695
    %v497 = vpow.pop %v496
    %v498 = vmul.f32 %v439, 1.442695
    %v499 = vpow.pop %v498
    %v500 = vmul.f32 %v440, 1.442695
    %v501 = vpow.pop %v500
    %v502 = vmul.f32 %v441, 1.442695
    %v503 = vpow.pop %v502
    %v504 = vmul.f32 %v442, 1.442695
    %v505 = vpow.pop %v504
    %v506 = vmul.f32 %v443, 1.442695
    %v507 = vpow.pop %v506
    %v508 = vsel %vm315, %v445, 0.0
    %509 = vadd.xlane.f32.xlu0 %v508
    %v510 = vpop.xlane.xlu0 %509
    %v511 = vsel %vm315, %v447, 0.0
    %512 = vadd.xlane.f32.xlu0 %v511
    %v513 = vpop.xlane.xlu0 %512
    %v514 = vsel %vm315, %v449, 0.0
    %515 = vadd.xlane.f32.xlu0 %v514
    %v516 = vpop.xlane.xlu0 %515
    %v517 = vsel %vm315, %v451, 0.0
    %518 = vadd.xlane.f32.xlu0 %v517
    %v519 = vpop.xlane.xlu0 %518
    %v520 = vsel %vm315, %v453, 0.0
    %521 = vadd.xlane.f32.xlu0 %v520
    %v522 = vpop.xlane.xlu0 %521
    %v523 = vsel %vm315, %v455, 0.0
    %524 = vadd.xlane.f32.xlu0 %v523
    %v525 = vpop.xlane.xlu0 %524
    %v526 = vsel %vm315, %v457, 0.0
    %527 = vadd.xlane.f32.xlu0 %v526
    %v528 = vpop.xlane.xlu0 %527
    %v529 = vsel %vm315, %v459, 0.0
    %530 = vadd.xlane.f32.xlu0 %v529
    %v531 = vpop.xlane.xlu0 %530
    %v532 = vsel %vm315, %v461, 0.0
    %533 = vadd.xlane.f32.xlu0 %v532
    %v534 = vpop.xlane.xlu0 %533
    %v535 = vsel %vm315, %v463, 0.0
    %536 = vadd.xlane.f32.xlu0 %v535
    %v537 = vpop.xlane.xlu0 %536
    %v538 = vsel %vm315, %v465, 0.0
    %539 = vadd.xlane.f32.xlu0 %v538
    %v540 = vpop.xlane.xlu0 %539
    %v541 = vsel %vm315, %v467, 0.0
    %542 = vadd.xlane.f32.xlu0 %v541
    %v543 = vpop.xlane.xlu0 %542
    %v544 = vsel %vm315, %v469, 0.0
    %545 = vadd.xlane.f32.xlu0 %v544
    %v546 = vpop.xlane.xlu0 %545
    %v547 = vsel %vm315, %v471, 0.0
    %548 = vadd.xlane.f32.xlu0 %v547
    %v549 = vpop.xlane.xlu0 %548
    %v550 = vsel %vm315, %v473, 0.0
    %551 = vadd.xlane.f32.xlu0 %v550
    %v552 = vpop.xlane.xlu0 %551
    %v553 = vsel %vm315, %v475, 0.0
    %554 = vadd.xlane.f32.xlu0 %v553
    %v555 = vpop.xlane.xlu0 %554
    %v556 = vsel %vm315, %v477, 0.0
    %557 = vadd.xlane.f32.xlu0 %v556
    %v558 = vpop.xlane.xlu0 %557
    %v559 = vsel %vm315, %v479, 0.0
    %560 = vadd.xlane.f32.xlu0 %v559
    %v561 = vpop.xlane.xlu0 %560
    %v562 = vsel %vm315, %v481, 0.0
    %563 = vadd.xlane.f32.xlu0 %v562
    %v564 = vpop.xlane.xlu0 %563
    %v565 = vsel %vm315, %v483, 0.0
    %566 = vadd.xlane.f32.xlu0 %v565
    %v567 = vpop.xlane.xlu0 %566
    %v568 = vsel %vm315, %v485, 0.0
    %569 = vadd.xlane.f32.xlu0 %v568
    %v570 = vpop.xlane.xlu0 %569
    %v571 = vsel %vm315, %v487, 0.0
    %572 = vadd.xlane.f32.xlu0 %v571
    %v573 = vpop.xlane.xlu0 %572
    %v574 = vsel %vm315, %v489, 0.0
    %575 = vadd.xlane.f32.xlu0 %v574
    %v576 = vpop.xlane.xlu0 %575
    %v577 = vsel %vm315, %v491, 0.0
    %578 = vadd.xlane.f32.xlu0 %v577
    %v579 = vpop.xlane.xlu0 %578
    %v580 = vsel %vm315, %v493, 0.0
    %581 = vadd.xlane.f32.xlu0 %v580
    %v582 = vpop.xlane.xlu0 %581
    %v583 = vsel %vm315, %v495, 0.0
    %584 = vadd.xlane.f32.xlu0 %v583
    %v585 = vpop.xlane.xlu0 %584
    %v586 = vsel %vm315, %v497, 0.0
    %587 = vadd.xlane.f32.xlu0 %v586
    %v588 = vpop.xlane.xlu0 %587
    %v589 = vsel %vm315, %v499, 0.0
    %590 = vadd.xlane.f32.xlu0 %v589
    %v591 = vpop.xlane.xlu0 %590
    %v592 = vsel %vm315, %v501, 0.0
    %593 = vadd.xlane.f32.xlu0 %v592
    %v594 = vpop.xlane.xlu0 %593
    %v595 = vsel %vm315, %v503, 0.0
    %596 = vadd.xlane.f32.xlu0 %v595
    %v597 = vpop.xlane.xlu0 %596
    %v598 = vsel %vm315, %v505, 0.0
    %599 = vadd.xlane.f32.xlu0 %v598
    %v600 = vpop.xlane.xlu0 %599
    %v601 = vsel %vm315, %v507, 0.0
    %602 = vadd.xlane.f32.xlu0 %v601
    %v603 = vpop.xlane.xlu0 %602
    %v604 = vld [vmem:[%s3] sm:$0xff]
    %v606 = vsel %vm315, %v445, 0
    %v609 = vsel %vm315, %v447, 0
    %v612 = vsel %vm315, %v449, 0
    %v615 = vsel %vm315, %v451, 0
    %v618 = vsel %vm315, %v453, 0
    %v621 = vsel %vm315, %v455, 0
    %v624 = vsel %vm315, %v457, 0
    %v627 = vsel %vm315, %v459, 0
    %v630 = vsel %vm315, %v461, 0
    %v633 = vsel %vm315, %v463, 0
    %v636 = vsel %vm315, %v465, 0
    %v639 = vsel %vm315, %v467, 0
    %v642 = vsel %vm315, %v469, 0
    %v645 = vsel %vm315, %v471, 0
    %v648 = vsel %vm315, %v473, 0
    %v651 = vsel %vm315, %v475, 0
    %v654 = vsel %vm315, %v477, 0
    %v657 = vsel %vm315, %v479, 0
    %v660 = vsel %vm315, %v481, 0
    %v663 = vsel %vm315, %v483, 0
    %v666 = vsel %vm315, %v485, 0
    %v669 = vsel %vm315, %v487, 0
    %v672 = vsel %vm315, %v489, 0
    %v675 = vsel %vm315, %v491, 0
    %v678 = vsel %vm315, %v493, 0
    %v681 = vsel %vm315, %v495, 0
    %v684 = vsel %vm315, %v497, 0
    %v687 = vsel %vm315, %v499, 0
    %v690 = vsel %vm315, %v501, 0
    %v693 = vsel %vm315, %v503, 0
    %v696 = vsel %vm315, %v505, 0
    %v699 = vsel %vm315, %v507, 0
    %701 = vmatprep.subr.mxu0 0.0
    %702 = vmatpush1.msra.mxu0 %v604
    %703 = vmatprep.subr.mxu0 0.0
    %704 = vmatpush1.msra.mxu0 0.0
    %705 = vmatprep.subr.mxu0 0.0
    %706 = vmatpush1.msra.mxu0 0.0
    %707 = vmatprep.subr.mxu0 0.0
    %708 = vmatpush1.msra.mxu0 0.0
    %709 = vmatprep.subr.mxu0 0.0
    %710 = vmatpush1.msra.mxu0 0.0
    %711 = vmatprep.subr.mxu0 0.0
    %712 = vmatpush1.msra.mxu0 0.0
    %713 = vmatprep.subr.mxu0 0.0
    %714 = vmatpush1.msra.mxu0 0.0
    %715 = vmatprep.subr.mxu0 0.0
    %716 = vmatpush1.msra.mxu0 0.0
    %717 = vmatprep.subr.mxu0 0.0
    %718 = vmatpush1.msra.mxu0 0.0
    %719 = vmatprep.subr.mxu0 0.0
    %720 = vmatpush1.msra.mxu0 0.0
    %721 = vmatprep.subr.mxu0 0.0
    %722 = vmatpush1.msra.mxu0 0.0
    %723 = vmatprep.subr.mxu0 0.0
    %724 = vmatpush1.msra.mxu0 0.0
    %725 = vmatprep.subr.mxu0 0.0
    %726 = vmatpush1.msra.mxu0 0.0
    %727 = vmatprep.subr.mxu0 0.0
    %728 = vmatpush1.msra.mxu0 0.0
    %729 = vmatprep.subr.mxu0 0.0
    %730 = vmatpush1.msra.mxu0 0.0
    %731 = vmatprep.subr.mxu0 0.0
    %732 = vmatpush1.msra.mxu0 0.0
    %733 = vmatprep.subr.mxu0 0.0
    %734 = vmatpush1.msra.mxu0 0.0
    %735 = vmatprep.subr.mxu0 0.0
    %736 = vmatpush1.msra.mxu0 0.0
    %737 = vmatprep.subr.mxu0 0.0
    %738 = vmatpush1.msra.mxu0 0.0
    %739 = vmatprep.subr.mxu0 0.0
    %740 = vmatpush1.msra.mxu0 0.0
    %741 = vmatprep.subr.mxu0 0.0
    %742 = vmatpush1.msra.mxu0 0.0
    %743 = vmatprep.subr.mxu0 0.0
    %744 = vmatpush1.msra.mxu0 0.0
    %745 = vmatprep.subr.mxu0 0.0
    %746 = vmatpush1.msra.mxu0 0.0
    %747 = vmatprep.subr.mxu0 0.0
    %748 = vmatpush1.msra.mxu0 0.0
    %749 = vmatprep.subr.mxu0 0.0
    %750 = vmatpush1.msra.mxu0 0.0
    %751 = vmatprep.subr.mxu0 0.0
    %752 = vmatpush1.msra.mxu0 0.0
    %753 = vmatprep.subr.mxu0 0.0
    %754 = vmatpush1.msra.mxu0 0.0
    %755 = vmatprep.subr.mxu0 0.0
    %756 = vmatpush1.msra.mxu0 0.0
    %757 = vmatprep.subr.mxu0 0.0
    %758 = vmatpush1.msra.mxu0 0.0
    %759 = vmatprep.subr.mxu0 0.0
    %760 = vmatpush1.msra.mxu0 0.0
    %761 = vmatprep.subr.mxu0 0.0
    %762 = vmatpush1.msra.mxu0 0.0
    %763 = vmatprep.subr.mxu0 0.0
    %764 = vmatpush1.msra.mxu0 0.0
    %765 = vmatprep.mubr.f32.mxu0 0.0
    %766 = vmatmul.mubr.f32.gmra.mrb[0].mxu0 %v606
    %v767 = vpop.f32.mrb[0].mxu0
    %v768 = vadd.f32 0.0, %v767
    %v769 = vpop.f32.mrb[0].mxu0
    %770 = vmatprep.mubr.f32.mxu0 0.0
    %771 = vmatmul.mubr.f32.gmra.mrb[0].mxu0 %v609
    %v772 = vpop.f32.mrb[0].mxu0
    %v773 = vadd.f32 0.0, %v772
    %v774 = vpop.f32.mrb[0].mxu0
    %775 = vmatprep.mubr.f32.mxu0 0.0
    %776 = vmatmul.mubr.f32.gmra.mrb[0].mxu0 %v612
    %v777 = vpop.f32.mrb[0].mxu0
    %v778 = vadd.f32 0.0, %v777
    %v779 = vpop.f32.mrb[0].mxu0
    %780 = vmatprep.mubr.f32.mxu0 0.0
    %781 = vmatmul.mubr.f32.gmra.mrb[0].mxu0 %v615
    %v782 = vpop.f32.mrb[0].mxu0
    %v783 = vadd.f32 0.0, %v782
    %v784 = vpop.f32.mrb[0].mxu0
    %785 = vmatprep.mubr.f32.mxu0 0.0
    %786 = vmatmul.mubr.f32.gmra.mrb[0].mxu0 %v618
    %v787 = vpop.f32.mrb[0].mxu0
    %v788 = vadd.f32 0.0, %v787
    %v789 = vpop.f32.mrb[0].mxu0
    %790 = vmatprep.mubr.f32.mxu0 0.0
    %791 = vmatmul.mubr.f32.gmra.mrb[0].mxu0 %v621
    %v792 = vpop.f32.mrb[0].mxu0
    %v793 = vadd.f32 0.0, %v792
    %v794 = vpop.f32.mrb[0].mxu0
    %795 = vmatprep.mubr.f32.mxu0 0.0
    %796 = vmatmul.mubr.f32.gmra.mrb[0].mxu0 %v624
    %v797 = vpop.f32.mrb[0].mxu0
    %v798 = vadd.f32 0.0, %v797
    %v799 = vpop.f32.mrb[0].mxu0
    %800 = vmatprep.mubr.f32.mxu0 0.0
    %801 = vmatmul.mubr.f32.gmra.mrb[0].mxu0 %v627
    %v802 = vpop.f32.mrb[0].mxu0
    %v803 = vadd.f32 0.0, %v802
    %v804 = vpop.f32.mrb[0].mxu0
    %805 = vmatprep.mubr.f32.mxu0 0.0
    %806 = vmatmul.mubr.f32.gmra.mrb[0].mxu0 %v630
    %v807 = vpop.f32.mrb[0].mxu0
    %v808 = vadd.f32 0.0, %v807
    %v809 = vpop.f32.mrb[0].mxu0
    %810 = vmatprep.mubr.f32.mxu0 0.0
    %811 = vmatmul.mubr.f32.gmra.mrb[0].mxu0 %v633
    %v812 = vpop.f32.mrb[0].mxu0
    %v813 = vadd.f32 0.0, %v812
    %v814 = vpop.f32.mrb[0].mxu0
    %815 = vmatprep.mubr.f32.mxu0 0.0
    %816 = vmatmul.mubr.f32.gmra.mrb[0].mxu0 %v636
    %v817 = vpop.f32.mrb[0].mxu0
    %v818 = vadd.f32 0.0, %v817
    %v819 = vpop.f32.mrb[0].mxu0
    %820 = vmatprep.mubr.f32.mxu0 0.0
    %821 = vmatmul.mubr.f32.gmra.mrb[0].mxu0 %v639
    %v822 = vpop.f32.mrb[0].mxu0
    %v823 = vadd.f32 0.0, %v822
    %v824 = vpop.f32.mrb[0].mxu0
    %825 = vmatprep.mubr.f32.mxu0 0.0
    %826 = vmatmul.mubr.f32.gmra.mrb[0].mxu0 %v642
    %v827 = vpop.f32.mrb[0].mxu0
    %v828 = vadd.f32 0.0, %v827
    %v829 = vpop.f32.mrb[0].mxu0
    %830 = vmatprep.mubr.f32.mxu0 0.0
    %831 = vmatmul.mubr.f32.gmra.mrb[0].mxu0 %v645
    %v832 = vpop.f32.mrb[0].mxu0
    %v833 = vadd.f32 0.0, %v832
    %v834 = vpop.f32.mrb[0].mxu0
    %835 = vmatprep.mubr.f32.mxu0 0.0
    %836 = vmatmul.mubr.f32.gmra.mrb[0].mxu0 %v648
    %v837 = vpop.f32.mrb[0].mxu0
    %v838 = vadd.f32 0.0, %v837
    %v839 = vpop.f32.mrb[0].mxu0
    %840 = vmatprep.mubr.f32.mxu0 0.0
    %841 = vmatmul.mubr.f32.gmra.mrb[0].mxu0 %v651
    %v842 = vpop.f32.mrb[0].mxu0
    %v843 = vadd.f32 0.0, %v842
    %v844 = vpop.f32.mrb[0].mxu0
    %845 = vmatprep.mubr.f32.mxu0 0.0
    %846 = vmatmul.mubr.f32.gmra.mrb[0].mxu0 %v654
    %v847 = vpop.f32.mrb[0].mxu0
    %v848 = vadd.f32 0.0, %v847
    %v849 = vpop.f32.mrb[0].mxu0
    %850 = vmatprep.mubr.f32.mxu0 0.0
    %851 = vmatmul.mubr.f32.gmra.mrb[0].mxu0 %v657
    %v852 = vpop.f32.mrb[0].mxu0
    %v853 = vadd.f32 0.0, %v852
    %v854 = vpop.f32.mrb[0].mxu0
    %855 = vmatprep.mubr.f32.mxu0 0.0
    %856 = vmatmul.mubr.f32.gmra.mrb[0].mxu0 %v660
    %v857 = vpop.f32.mrb[0].mxu0
    %v858 = vadd.f32 0.0, %v857
    %v859 = vpop.f32.mrb[0].mxu0
    %860 = vmatprep.mubr.f32.mxu0 0.0
    %861 = vmatmul.mubr.f32.gmra.mrb[0].mxu0 %v663
    %v862 = vpop.f32.mrb[0].mxu0
    %v863 = vadd.f32 0.0, %v862
    %v864 = vpop.f32.mrb[0].mxu0
    %865 = vmatprep.mubr.f32.mxu0 0.0
    %866 = vmatmul.mubr.f32.gmra.mrb[0].mxu0 %v666
    %v867 = vpop.f32.mrb[0].mxu0
    %v868 = vadd.f32 0.0, %v867
    %v869 = vpop.f32.mrb[0].mxu0
    %870 = vmatprep.mubr.f32.mxu0 0.0
    %871 = vmatmul.mubr.f32.gmra.mrb[0].mxu0 %v669
    %v872 = vpop.f32.mrb[0].mxu0
    %v873 = vadd.f32 0.0, %v872
    %v874 = vpop.f32.mrb[0].mxu0
    %875 = vmatprep.mubr.f32.mxu0 0.0
    %876 = vmatmul.mubr.f32.gmra.mrb[0].mxu0 %v672
    %v877 = vpop.f32.mrb[0].mxu0
    %v878 = vadd.f32 0.0, %v877
    %v879 = vpop.f32.mrb[0].mxu0
    %880 = vmatprep.mubr.f32.mxu0 0.0
    %881 = vmatmul.mubr.f32.gmra.mrb[0].mxu0 %v675
    %v882 = vpop.f32.mrb[0].mxu0
    %v883 = vadd.f32 0.0, %v882
    %v884 = vpop.f32.mrb[0].mxu0
    %885 = vmatprep.mubr.f32.mxu0 0.0
    %886 = vmatmul.mubr.f32.gmra.mrb[0].mxu0 %v678
    %v887 = vpop.f32.mrb[0].mxu0
    %v888 = vadd.f32 0.0, %v887
    %v889 = vpop.f32.mrb[0].mxu0
    %890 = vmatprep.mubr.f32.mxu0 0.0
    %891 = vmatmul.mubr.f32.gmra.mrb[0].mxu0 %v681
    %v892 = vpop.f32.mrb[0].mxu0
    %v893 = vadd.f32 0.0, %v892
    %v894 = vpop.f32.mrb[0].mxu0
    %895 = vmatprep.mubr.f32.mxu0 0.0
    %896 = vmatmul.mubr.f32.gmra.mrb[0].mxu0 %v684
    %v897 = vpop.f32.mrb[0].mxu0
    %v898 = vadd.f32 0.0, %v897
    %v899 = vpop.f32.mrb[0].mxu0
    %900 = vmatprep.mubr.f32.mxu0 0.0
    %901 = vmatmul.mubr.f32.gmra.mrb[0].mxu0 %v687
    %v902 = vpop.f32.mrb[0].mxu0
    %v903 = vadd.f32 0.0, %v902
    %v904 = vpop.f32.mrb[0].mxu0
    %905 = vmatprep.mubr.f32.mxu0 0.0
    %906 = vmatmul.mubr.f32.gmra.mrb[0].mxu0 %v690
    %v907 = vpop.f32.mrb[0].mxu0
    %v908 = vadd.f32 0.0, %v907
    %v909 = vpop.f32.mrb[0].mxu0
    %910 = vmatprep.mubr.f32.mxu0 0.0
    %911 = vmatmul.mubr.f32.gmra.mrb[0].mxu0 %v693
    %v912 = vpop.f32.mrb[0].mxu0
    %v913 = vadd.f32 0.0, %v912
    %v914 = vpop.f32.mrb[0].mxu0
    %915 = vmatprep.mubr.f32.mxu0 0.0
    %916 = vmatmul.mubr.f32.gmra.mrb[0].mxu0 %v696
    %v917 = vpop.f32.mrb[0].mxu0
    %v918 = vadd.f32 0.0, %v917
    %v919 = vpop.f32.mrb[0].mxu0
    %920 = vmatprep.mubr.f32.mxu0 0.0
    %921 = vmatmul.mubr.f32.gmra.mrb[0].mxu0 %v699
    %v922 = vpop.f32.mrb[0].mxu0
    %v923 = vadd.f32 0.0, %v922
    %v924 = vpop.f32.mrb[0].mxu0
    %925 = vdwg.mxu0
    %v926 = vrcp.pop %v510
    %v927 = vrcp.pop %v513
    %v928 = vrcp.pop %v516
    %v929 = vrcp.pop %v519
    %v930 = vrcp.pop %v522
    %v931 = vrcp.pop %v525
    %v932 = vrcp.pop %v528
    %v933 = vrcp.pop %v531
    %v934 = vrcp.pop %v534
    %v935 = vrcp.pop %v537
    %v936 = vrcp.pop %v540
    %v937 = vrcp.pop %v543
    %v938 = vrcp.pop %v546
    %v939 = vrcp.pop %v549
    %v940 = vrcp.pop %v552
    %v941 = vrcp.pop %v555
    %v942 = vrcp.pop %v558
    %v943 = vrcp.pop %v561
    %v944 = vrcp.pop %v564
    %v945 = vrcp.pop %v567
    %v946 = vrcp.pop %v570
    %v947 = vrcp.pop %v573
    %v948 = vrcp.pop %v576
    %v949 = vrcp.pop %v579
    %v950 = vrcp.pop %v582
    %v951 = vrcp.pop %v585
    %v952 = vrcp.pop %v588
    %v953 = vrcp.pop %v591
    %v954 = vrcp.pop %v594
    %v955 = vrcp.pop %v597
    %v956 = vrcp.pop %v600
    %v957 = vrcp.pop %v603
    %v958 = vmul.f32 %v768, %v926
    %v959 = vmul.f32 %v773, %v927
    %v960 = vmul.f32 %v778, %v928
    %v961 = vmul.f32 %v783, %v929
    %v962 = vmul.f32 %v788, %v930
    %v963 = vmul.f32 %v793, %v931
    %v964 = vmul.f32 %v798, %v932
    %v965 = vmul.f32 %v803, %v933
    %v966 = vmul.f32 %v808, %v934
    %v967 = vmul.f32 %v813, %v935
    %v968 = vmul.f32 %v818, %v936
    %v969 = vmul.f32 %v823, %v937
    %v970 = vmul.f32 %v828, %v938
    %v971 = vmul.f32 %v833, %v939
    %v972 = vmul.f32 %v838, %v940
    %v973 = vmul.f32 %v843, %v941
    %v974 = vmul.f32 %v848, %v942
    %v975 = vmul.f32 %v853, %v943
    %v976 = vmul.f32 %v858, %v944
    %v977 = vmul.f32 %v863, %v945
    %v978 = vmul.f32 %v868, %v946
    %v979 = vmul.f32 %v873, %v947
    %v980 = vmul.f32 %v878, %v948
    %v981 = vmul.f32 %v883, %v949
    %v982 = vmul.f32 %v888, %v950
    %v983 = vmul.f32 %v893, %v951
    %v984 = vmul.f32 %v898, %v952
    %v985 = vmul.f32 %v903, %v953
    %v986 = vmul.f32 %v908, %v954
    %v987 = vmul.f32 %v913, %v955
    %v988 = vmul.f32 %v918, %v956
    %v989 = vmul.f32 %v923, %v957
    %v990 = vld [vmem:[%s4] sm:$0x1]
    %v992 = vlaneseq
    %v993 = vshrl.u32 %v992, 7
    %v994 = vsub.s32 0, %v993
    %v995 = vrot.slane %v990, %v994
    %v997 = vadd.f32 %v958, %v995
    %v998 = vadd.f32 %v959, %v995
    %v999 = vadd.f32 %v960, %v995
    %v1000 = vadd.f32 %v961, %v995
    %v1001 = vadd.f32 %v962, %v995
    %v1002 = vadd.f32 %v963, %v995
    %v1003 = vadd.f32 %v964, %v995
    %v1004 = vadd.f32 %v965, %v995
    %v1005 = vadd.f32 %v966, %v995
    %v1006 = vadd.f32 %v967, %v995
    %v1007 = vadd.f32 %v968, %v995
    %v1008 = vadd.f32 %v969, %v995
    %v1009 = vadd.f32 %v970, %v995
    %v1010 = vadd.f32 %v971, %v995
    %v1011 = vadd.f32 %v972, %v995
    %v1012 = vadd.f32 %v973, %v995
    %v1013 = vadd.f32 %v974, %v995
    %v1014 = vadd.f32 %v975, %v995
    %v1015 = vadd.f32 %v976, %v995
    %v1016 = vadd.f32 %v977, %v995
    %v1017 = vadd.f32 %v978, %v995
    %v1018 = vadd.f32 %v979, %v995
    %v1019 = vadd.f32 %v980, %v995
    %v1020 = vadd.f32 %v981, %v995
    %v1021 = vadd.f32 %v982, %v995
    %v1022 = vadd.f32 %v983, %v995
    %v1023 = vadd.f32 %v984, %v995
    %v1024 = vadd.f32 %v985, %v995
    %v1025 = vadd.f32 %v986, %v995
    %v1026 = vadd.f32 %v987, %v995
    %v1027 = vadd.f32 %v988, %v995
    %v1028 = vadd.f32 %v989, %v995
    %v1029 = vadd.f32 %v997, %v35
    %v1030 = vadd.f32 %v998, %v36
    %v1031 = vadd.f32 %v999, %v37
    %v1032 = vadd.f32 %v1000, %v38
    %v1033 = vadd.f32 %v1001, %v39
    %v1034 = vadd.f32 %v1002, %v40
    %v1035 = vadd.f32 %v1003, %v41
    %v1036 = vadd.f32 %v1004, %v42
    %v1037 = vadd.f32 %v1005, %v43
    %v1038 = vadd.f32 %v1006, %v44
    %v1039 = vadd.f32 %v1007, %v45
    %v1040 = vadd.f32 %v1008, %v46
    %v1041 = vadd.f32 %v1009, %v47
    %v1042 = vadd.f32 %v1010, %v48
    %v1043 = vadd.f32 %v1011, %v49
    %v1044 = vadd.f32 %v1012, %v50
    %v1045 = vadd.f32 %v1013, %v51
    %v1046 = vadd.f32 %v1014, %v52
    %v1047 = vadd.f32 %v1015, %v53
    %v1048 = vadd.f32 %v1016, %v54
    %v1049 = vadd.f32 %v1017, %v55
    %v1050 = vadd.f32 %v1018, %v56
    %v1051 = vadd.f32 %v1019, %v57
    %v1052 = vadd.f32 %v1020, %v58
    %v1053 = vadd.f32 %v1021, %v59
    %v1054 = vadd.f32 %v1022, %v60
    %v1055 = vadd.f32 %v1023, %v61
    %v1056 = vadd.f32 %v1024, %v62
    %v1057 = vadd.f32 %v1025, %v63
    %v1058 = vadd.f32 %v1026, %v64
    %v1059 = vadd.f32 %v1027, %v65
    %v1060 = vadd.f32 %v1028, %v66
    %v1061 = vmax.f32 %v1029, 0.0
    %v1062 = vmax.f32 %v1030, 0.0
    %v1063 = vmax.f32 %v1031, 0.0
    %v1064 = vmax.f32 %v1032, 0.0
    %v1065 = vmax.f32 %v1033, 0.0
    %v1066 = vmax.f32 %v1034, 0.0
    %v1067 = vmax.f32 %v1035, 0.0
    %v1068 = vmax.f32 %v1036, 0.0
    %v1069 = vmax.f32 %v1037, 0.0
    %v1070 = vmax.f32 %v1038, 0.0
    %v1071 = vmax.f32 %v1039, 0.0
    %v1072 = vmax.f32 %v1040, 0.0
    %v1073 = vmax.f32 %v1041, 0.0
    %v1074 = vmax.f32 %v1042, 0.0
    %v1075 = vmax.f32 %v1043, 0.0
    %v1076 = vmax.f32 %v1044, 0.0
    %v1077 = vmax.f32 %v1045, 0.0
    %v1078 = vmax.f32 %v1046, 0.0
    %v1079 = vmax.f32 %v1047, 0.0
    %v1080 = vmax.f32 %v1048, 0.0
    %v1081 = vmax.f32 %v1049, 0.0
    %v1082 = vmax.f32 %v1050, 0.0
    %v1083 = vmax.f32 %v1051, 0.0
    %v1084 = vmax.f32 %v1052, 0.0
    %v1085 = vmax.f32 %v1053, 0.0
    %v1086 = vmax.f32 %v1054, 0.0
    %v1087 = vmax.f32 %v1055, 0.0
    %v1088 = vmax.f32 %v1056, 0.0
    %v1089 = vmax.f32 %v1057, 0.0
    %v1090 = vmax.f32 %v1058, 0.0
    %v1091 = vmax.f32 %v1059, 0.0
    %v1092 = vmax.f32 %v1060, 0.0
    %1093 = vst [vmem:[#allocation5] sm:$0xff] %v1061
    %1094 = vst [vmem:[#allocation5 + $0x8] sm:$0xff] %v1062
    %1095 = vst [vmem:[#allocation5 + $0x10] sm:$0xff] %v1063
    %1096 = vst [vmem:[#allocation5 + $0x18] sm:$0xff] %v1064
    %1097 = vst [vmem:[#allocation5 + $0x20] sm:$0xff] %v1065
    %1098 = vst [vmem:[#allocation5 + $0x28] sm:$0xff] %v1066
    %1099 = vst [vmem:[#allocation5 + $0x30] sm:$0xff] %v1067
    %1100 = vst [vmem:[#allocation5 + $0x38] sm:$0xff] %v1068
    %1101 = vst [vmem:[#allocation5 + $0x40] sm:$0xff] %v1069
    %1102 = vst [vmem:[#allocation5 + $0x48] sm:$0xff] %v1070
    %1103 = vst [vmem:[#allocation5 + $0x50] sm:$0xff] %v1071
    %1104 = vst [vmem:[#allocation5 + $0x58] sm:$0xff] %v1072
    %1105 = vst [vmem:[#allocation5 + $0x60] sm:$0xff] %v1073
    %1106 = vst [vmem:[#allocation5 + $0x68] sm:$0xff] %v1074
    %1107 = vst [vmem:[#allocation5 + $0x70] sm:$0xff] %v1075
    %1108 = vst [vmem:[#allocation5 + $0x78] sm:$0xff] %v1076
    %1109 = vst [vmem:[#allocation5 + $0x80] sm:$0xff] %v1077
    %1110 = vst [vmem:[#allocation5 + $0x88] sm:$0xff] %v1078
    %1111 = vst [vmem:[#allocation5 + $0x90] sm:$0xff] %v1079
    %1112 = vst [vmem:[#allocation5 + $0x98] sm:$0xff] %v1080
    %1113 = vst [vmem:[#allocation5 + $0xa0] sm:$0xff] %v1081
    %1114 = vst [vmem:[#allocation5 + $0xa8] sm:$0xff] %v1082
    %1115 = vst [vmem:[#allocation5 + $0xb0] sm:$0xff] %v1083
    %1116 = vst [vmem:[#allocation5 + $0xb8] sm:$0xff] %v1084
    %1117 = vst [vmem:[#allocation5 + $0xc0] sm:$0xff] %v1085
    %1118 = vst [vmem:[#allocation5 + $0xc8] sm:$0xff] %v1086
    %1119 = vst [vmem:[#allocation5 + $0xd0] sm:$0xff] %v1087
    %1120 = vst [vmem:[#allocation5 + $0xd8] sm:$0xff] %v1088
    %1121 = vst [vmem:[#allocation5 + $0xe0] sm:$0xff] %v1089
    %1122 = vst [vmem:[#allocation5 + $0xe8] sm:$0xff] %v1090
    %1123 = vst [vmem:[#allocation5 + $0xf0] sm:$0xff] %v1091
    %1124 = vst [vmem:[#allocation5 + $0xf8] sm:$0xff] %v1092
    // Predicated region
    $region26: #{tpu_custom_call.1} parent=1 // pred_check
      _
    $region27: #{tpu_custom_call.1} parent=1 // pred_check_branch
      %1126 = sbr.rel (0) target = $region29
    $region28: #{tpu_custom_call.1} parent=1 // pred_region
      %s1128 = ssub.s32 4096, 4096
      %1129 = vsyncadd [#allocation4], %s1128
      %s1130 = sshll.u32 [#allocation5], 4
      %s1131 = int_to_ptr.vmem [resolvable:$true] %s1130
      %1136 = dma.vmem_to_hbm [thread:$0]  %s1131, 4096, %s5, [#allocation4], 128, 128, 8
    $region29: #{tpu_custom_call.1} parent=1 // pred_fallthru
      _
    // Predicated region
    $region30: #{tpu_custom_call.1} parent=1 // pred_check
      _
    $region31: #{tpu_custom_call.1} parent=1 // pred_check_branch
      %1138 = sbr.rel (0) target = $region33
    $region32: #{tpu_custom_call.1} parent=1 // pred_region
      %1139 = dma.done [#allocation4], 4096
    $region33: #{tpu_custom_call.1} parent=1 // pred_fallthru
      _
    %1140 = vsyncpa [#allocation3], 1
    %1141 = vsyncpa [#allocation4], 1

</llo_original>
